<compile_context>
chip_gen: v6e
topology: v6e:2x2x1
jax: 0.10.0
libtpu: 0.0.40
codegen_flags: <defaults>
</compile_context>

<pallas_src>
import functools
import math

import numpy as np
import jax
import jax.numpy as jnp
from jax import lax
from jax.scipy.special import logsumexp
from jax.experimental import pallas as pl
from jax.experimental.pallas import tpu as pltpu


# ---------------------------------------------------------------------------
# tiling helpers
# ---------------------------------------------------------------------------
_MAX_TILE_ROWS = 4096           # large row tiles amortize the ~0.35us/grid-step overhead
_VMEM_TILE_BUDGET = 12 << 20    # x double-buffer + in-kernel temps; safe under v5e's
                                # 16 MiB default scoped VMEM, tiny vs v6e/v7x


def _round_up(v, m):
    return ((v + m - 1) // m) * m


def _pick_tile(n, d, max_rows=_MAX_TILE_ROWS):
    """Pick a row tile TN for an (n, d) f32 input.

    TN is either == n (tiny batches: every block dim equals the array dim) or
    a multiple of 128 <= n (lane-dense (1, TN) stores; the partial last grid
    block is masked by Pallas).  Tiles are balanced across grid steps, and
    batches with n > 256 always get >= 2 steps so both v7x TensorCores are fed.
    """
    if n < 128:
        return n
    dpad = _round_up(d, 128)
    # per-row VMEM bytes: double-buffered lane-padded x tile + x*x temp + row/score slabs
    per_row = (3 * dpad + 64) * 4
    cap = max(128, min(int(max_rows), _VMEM_TILE_BUDGET // per_row))
    cap = (cap // 128) * 128
    nsteps = pl.cdiv(n, cap)
    if n > 256:
        nsteps = max(nsteps, 2)          # v7x: >=2 grid steps -> both TensorCores get work
    tn = _round_up(pl.cdiv(n, nsteps), 128)
    return max(128, min(tn, cap, (n // 128) * 128))


def _vmem_limit_bytes(tn, d, k):
    """Explicit scoped-VMEM limit sized to the actual tile working set (+2x headroom)."""
    dpad = _round_up(d, 128)
    kpad = _round_up(k + 1, 8)
    est = 2 * tn * dpad * 4              # double-buffered x tile
    est += tn * dpad * 4                 # x*x temp
    est += 6 * 8 * tn * 4                # (1, TN) label/out/sumsq rows (sublane padded)
    est += 4 * kpad * tn * 4             # (K, TN) score temps
    est += 4 * kpad * dpad * 4           # per-component constants
    # >= the 32 MiB default scoped limit (v6e/v7x); always < v7x's 64 MiB physical VMEM
    return int(min(48 << 20, max(32 << 20, 2 * est)))


# ---------------------------------------------------------------------------
# Pallas kernels
# ---------------------------------------------------------------------------
_NT = (((1,), (1,)), ((), ()))    # contract the last dim of both operands -> samples on lanes


def _base_scores(x, a_ref, ones_ref, i2c_ref):
    """(K, TN) un-biased per-component scores, samples on the lane axis.

    base[k, n] = A_k . x_n - i2c_k * ||x_n||^2
    with A = 2*i2c*mean; the -i2c*||mu||^2 / neglogvar / pi / log-softmax terms
    are folded into the bias by the wrapper (all parameter math hoisted out).
    ||x||^2 is computed by a (1, D) ones-row dot so it lands lane-major with no
    relayout; this is exact for the isotropic covariance implemented here.
    # TODO(synk): quadratic expansion is less precise than a direct (x-mu)^2
    # sum for very large-magnitude inputs; fine at typical DGD latent scales.
    # TODO(synk): verify with pl.lower_as_mlir that the NT dot_general does not
    # insert a per-tile transpose of the (TN, D) operand on the target chip.
    """
    xm = lax.dot_general(a_ref[...], x, _NT, preferred_element_type=jnp.float32)        # (K, TN)
    sumsq = lax.dot_general(ones_ref[...], x * x, _NT, preferred_element_type=jnp.float32)  # (1, TN)
    return xm - i2c_ref[...] * sumsq


def _lse_over_components(s):
    m = jnp.max(s, axis=0, keepdims=True)
    return m + jnp.log(jnp.sum(jnp.exp(s - m), axis=0, keepdims=True))


def _class_sum(s, cls_col, lab_row):
    # cls_col: (K, 1) int32 class ids (wrapper constant); lab_row: (1, TN) int32 labels
    return jnp.sum(jnp.where(cls_col == lab_row, s, 0.0), axis=0, keepdims=True)


def _unsup_kernel(x_ref, a_ref, ones_ref, i2c_ref, bias_ref, out_ref):
    s = _base_scores(x_ref[...], a_ref, ones_ref, i2c_ref) + bias_ref[...]
    out_ref[...] = -_lse_over_components(s)          # prior already folded into bias


def _sup_kernel(lab_ref, x_ref, a_ref, ones_ref, i2c_ref, bias_ref, cls_ref, out_ref,
                *, nclass):
    s = _base_scores(x_ref[...], a_ref, ones_ref, i2c_ref) + bias_ref[...]
    y_sel = _class_sum(s, cls_ref[...], lab_ref[...])
    out_ref[...] = -(y_sel * nclass)                  # prior/(Nclass*Ncpc) folded into bias


def _mixed_kernel(lab_ref, x_ref, a_ref, ones_ref, i2c_ref, bias_u_ref, bias_s_ref,
                  cls_ref, prior_ref, out_ref, *, nclass):
    base = _base_scores(x_ref[...], a_ref, ones_ref, i2c_ref)
    lab = lab_ref[...]
    lse = _lse_over_components(base + bias_u_ref[...])
    y_sup = jnp.abs(_class_sum(base + bias_s_ref[...], cls_ref[...], lab) * nclass)
    prior = prior_ref[0, 0]
    # reference semantics: 999 rows -> -((-(lse+prior)) + prior) = lse
    #                      labelled -> -( |y*Nclass| + prior )   (abs only on this path)
    out_ref[...] = jnp.where(lab == 999, lse, -(y_sup + prior))


# ---------------------------------------------------------------------------
# pallas_call wrappers
# ---------------------------------------------------------------------------
def _specs(tn, d, k):
    x_spec = pl.BlockSpec((tn, d), lambda i: (i, 0))        # (TN, D) row tile of x
    kd = pl.BlockSpec((k, d), lambda i: (0, 0))             # (K, D) constant
    oned = pl.BlockSpec((1, d), lambda i: (0, 0))           # (1, D) ones row
    k1 = pl.BlockSpec((k, 1), lambda i: (0, 0))             # (K, 1) constant column
    row = pl.BlockSpec((1, tn), lambda i: (0, i))           # lane-dense (1, TN) row
    return x_spec, kd, oned, k1, row


def _mosaic_params(tn, d, k):
    return pltpu.CompilerParams(
        dimension_semantics=("parallel",),
        vmem_limit_bytes=_vmem_limit_bytes(tn, d, k))


def gmm_unsup_nll(x, a, ones_row, i2c, bias_u, *, max_rows=_MAX_TILE_ROWS):
    n, d = x.shape
    k = a.shape[0]
    tn = _pick_tile(n, d, max_rows)
    x_spec, kd, oned, k1, row = _specs(tn, d, k)
    out = pl.pallas_call(
        _unsup_kernel,
        out_shape=jax.ShapeDtypeStruct((1, n), jnp.float32),
        grid=(pl.cdiv(n, tn),),
        in_specs=[x_spec, kd, oned, k1, k1],
        out_specs=row,
        compiler_params=_mosaic_params(tn, d, k),
    )(x, a, ones_row, i2c, bias_u)
    return out[0]


def gmm_sup_nll(x, lab_row, a, ones_row, i2c, bias_s, cls, *, nclass,
                max_rows=_MAX_TILE_ROWS):
    n, d = x.shape
    k = a.shape[0]
    tn = _pick_tile(n, d, max_rows)
    x_spec, kd, oned, k1, row = _specs(tn, d, k)
    kern = functools.partial(_sup_kernel, nclass=nclass)
    out = pl.pallas_call(
        kern,
        out_shape=jax.ShapeDtypeStruct((1, n), jnp.float32),
        grid=(pl.cdiv(n, tn),),
        in_specs=[row, x_spec, kd, oned, k1, k1, k1],
        out_specs=row,
        compiler_params=_mosaic_params(tn, d, k),
    )(lab_row, x, a, ones_row, i2c, bias_s, cls)
    return out[0]


def gmm_mixed_nll(x, lab_row, a, ones_row, i2c, bias_u, bias_s, cls, prior11,
                  *, nclass, max_rows=_MAX_TILE_ROWS):
    n, d = x.shape
    k = a.shape[0]
    tn = _pick_tile(n, d, max_rows)
    x_spec, kd, oned, k1, row = _specs(tn, d, k)
    kern = functools.partial(_mixed_kernel, nclass=nclass)
    out = pl.pallas_call(
        kern,
        out_shape=jax.ShapeDtypeStruct((1, n), jnp.float32),
        grid=(pl.cdiv(n, tn),),
        in_specs=[
            row, x_spec, kd, oned, k1, k1, k1, k1,
            pl.BlockSpec(memory_space=pltpu.MemorySpace.SMEM),   # scalar prior log-prob
        ],
        out_specs=row,
        compiler_params=_mosaic_params(tn, d, k),
    )(lab_row, x, a, ones_row, i2c, bias_u, bias_s, cls, prior11)
    return out[0]


# ---------------------------------------------------------------------------
# Module (parameters + glue)
# ---------------------------------------------------------------------------
class GaussianMixtureSupervisedPallas:
    def __init__(self, Nclass, Ncpc, dim, covariance_type="isotropic",
                 mean_init=(2.0, 5.0), sd_init=(0.5, 1.0), alpha=1.0, seed=0,
                 max_tile=_MAX_TILE_ROWS):
        if covariance_type != "isotropic":
            # TODO(synk): 'diagonal'/'fixed' covariance variants not implemented
            # (the rank-1 sum-of-squares trick only holds for isotropic).
            raise NotImplementedError("only isotropic covariance implemented")
        self.Nclass, self.Ncpc, self.dim = Nclass, Ncpc, dim
        K = self.n_mix_comp = Nclass * Ncpc
        self._max_tile = int(max_tile)

        radius, sharpness = float(mean_init[0]), float(mean_init[1])
        # softball prior (approximate uniform m-ball) sample for the means.
        key = jax.random.PRNGKey(seed)
        k1, k2 = jax.random.split(key)
        s = jax.random.normal(k1, (K, dim), dtype=jnp.float32)
        s = s / jnp.linalg.norm(s, axis=-1, keepdims=True)
        r = radius * jax.random.uniform(k2, (K, 1), dtype=jnp.float32) ** (1.0 / dim)
        self.mean = s * r                                             # (K, D)

        nlv0 = -2.0 * math.log(sd_init[0])
        self.neglogvar = jnp.full((K, 1), nlv0, dtype=jnp.float32)    # isotropic
        self._neglogvar_factor = dim * 0.5
        self.weight = jnp.ones((K,), dtype=jnp.float32)
        self._pi_term = -0.5 * dim * math.log(2.0 * math.pi)

        self._weight_alpha = alpha
        self._dirichlet_constant = math.lgamma(K * alpha) - K * math.lgamma(alpha)
        self._mean_prior_norm = (math.lgamma(1.0 + dim * 0.5)
                                 - dim * (math.log(radius) + 0.5 * math.log(math.pi)))
        self._mean_prior_radius = radius
        self._mean_prior_sharpness = sharpness
        self._nlv_prior_mean = nlv0
        self._nlv_prior_sd = float(sd_init[1])

    # ---- parameter-only glue (plain JAX; loop-invariant, hoisted out of kernel) ----
    def _score_params(self):
        i2c = 0.5 * jnp.exp(self.neglogvar)                           # (K,1) = 1/(2 sigma^2)
        a = (2.0 * i2c * self.mean).astype(jnp.float32)               # (K,D)
        ones_row = jnp.ones((1, self.dim), dtype=jnp.float32)         # (1,D) for sum(x^2)
        bias0 = (self._neglogvar_factor * jnp.sum(self.neglogvar, axis=-1, keepdims=True)
                 + self._pi_term
                 - i2c * jnp.sum(self.mean * self.mean, axis=-1, keepdims=True))  # (K,1)
        return a, ones_row, i2c.astype(jnp.float32), bias0

    def _class_ids(self):
        return (jnp.arange(self.n_mix_comp, dtype=jnp.int32) // self.Ncpc)[:, None]  # (K,1)

    def _log_softmax_unsup(self):
        return (self.weight - logsumexp(self.weight))[:, None]        # (K,1)

    def _log_softmax_sup(self):
        w = self.weight.reshape(self.Nclass, self.Ncpc)
        return (w - logsumexp(w, axis=-1, keepdims=True)).reshape(-1, 1)

    def prior_log_prob(self):
        p = self._dirichlet_constant
        if self._weight_alpha != 1:
            probs = jax.nn.softmax(self.weight)
            p = p + (self._weight_alpha - 1.0) * jnp.sum(jnp.log(probs))
        mean_norm = jnp.linalg.norm(self.mean, axis=-1)
        p = p + jnp.sum(
            self._mean_prior_norm
            - jnp.log(1.0 + jnp.exp(self._mean_prior_sharpness
                                    * (mean_norm / self._mean_prior_radius - 1.0))))
        sd, mu = self._nlv_prior_sd, self._nlv_prior_mean
        p = p + jnp.sum(-math.log(sd) - 0.5 * math.log(2.0 * math.pi)
                        - 0.5 * ((self.neglogvar - mu) / sd) ** 2)
        return jnp.asarray(p, jnp.float32)

    # ---- forward ----
    def forward(self, x, label=None):
        x = jnp.asarray(x, jnp.float32)
        prior = self.prior_log_prob()
        a, ones_row, i2c, bias0 = self._score_params()

        if label is None:
            # logsumexp(y_k + prior) = logsumexp(y_k) + prior -> fold prior into bias
            bias_u = bias0 + self._log_softmax_unsup() + prior
            return gmm_unsup_nll(x, a, ones_row, i2c, bias_u, max_rows=self._max_tile)

        # TODO(synk): `999 in label` needs host-materialized labels; this forward is
        # not end-to-end traceable/jittable with device labels (same as before).
        label = np.asarray(label)
        lab_row = jnp.asarray(label, jnp.int32)[None, :]               # (1, N) lane-dense
        bias_s = bias0 + self._log_softmax_sup()
        cls = self._class_ids()

        if 999 in label:
            # mixed supervised / unsupervised batch: ONE fused pass over x
            bias_u = bias0 + self._log_softmax_unsup()
            prior11 = jnp.reshape(prior, (1, 1)).astype(jnp.float32)
            return gmm_mixed_nll(x, lab_row, a, ones_row, i2c, bias_u, bias_s, cls,
                                 prior11, nclass=self.Nclass, max_rows=self._max_tile)

        # fully labelled: Nclass * sum over the Ncpc selected components picks up
        # exactly +prior when prior/(Nclass*Ncpc) is folded into every component bias.
        bias_s = bias_s + prior / (self.Nclass * self.Ncpc)
        return gmm_sup_nll(x, lab_row, a, ones_row, i2c, bias_s, cls,
                           nclass=self.Nclass, max_rows=self._max_tile)


# ---------------------------------------------------------------------------
# Pure-JAX references (mirror the PyTorch broadcasting exactly)
# ---------------------------------------------------------------------------
def _ref_unsup(model, x):
    cov = jnp.exp(-model.neglogvar)                                   # (K, 1)
    y = -jnp.sum((x[:, None, :] - model.mean) ** 2 / (2.0 * cov), axis=-1)
    y = y + model._neglogvar_factor * jnp.sum(model.neglogvar, axis=-1)
    y = y + model._pi_term
    y = y + (model.weight - logsumexp(model.weight))
    y = logsumexp(y, axis=-1)
    y = y + model.prior_log_prob()
    return -y


def _ref_sup_scores(model, x):
    K, D = model.mean.shape
    m = model.mean.reshape(model.Nclass, model.Ncpc, D)
    diff = x[:, None, None, :] - m                                    # (N, C, J, D)
    scale = 0.5 * jnp.exp(model.neglogvar[:, :, None])                # (K,1,1)  (Ncpc == 1)
    y = -jnp.sum(diff ** 2 * scale, axis=-1)
    y = y + model._neglogvar_factor * jnp.sum(
        model.neglogvar.reshape(model.Nclass, model.Ncpc, -1), axis=-1)
    y = y + model._pi_term
    w = model.weight.reshape(model.Nclass, model.Ncpc)
    y = y + (w - logsumexp(w, axis=-1, keepdims=True))
    return y.sum(-1)                                                  # (N, Nclass)


def _ref_sup(model, x, label):
    y = _ref_sup_scores(model, x)
    y = y[jnp.arange(x.shape[0]), jnp.asarray(label)] * model.Nclass
    y = y + model.prior_log_prob()
    return -y


def _ref_mixed(model, x, label):
    prior = model.prior_log_prob()
    nll_u = _ref_unsup(model, x)                                      # already -(lse+prior)
    y_cls = _ref_sup_scores(model, x)
    safe = np.where(label == 999, 0, label)
    y_sup = jnp.abs(y_cls[jnp.arange(x.shape[0]), jnp.asarray(safe)] * model.Nclass)
    y = jnp.where(jnp.asarray(label == 999), nll_u, y_sup)
    y = y + prior
    return -y


# ---------------------------------------------------------------------------
if __name__ == "__main__":
    Nclass, Ncpc, dim = 4, 1, 16
    N = 32

    model = GaussianMixtureSupervisedPallas(Nclass, Ncpc, dim, seed=0)

    key = jax.random.PRNGKey(0)
    kx, kl = jax.random.split(key)
    x = jax.random.normal(kx, (N, dim), dtype=jnp.float32)
    label = np.asarray(jax.random.randint(kl, (N,), 0, Nclass))
    label_mixed = label.copy()
    label_mixed[::3] = 999                                            # mixed batch

    out_unsup = jax.block_until_ready(model.forward(x))               # label=None path
    out_sup = jax.block_until_ready(model.forward(x, label))          # fully-labelled path
    out_mixed = jax.block_until_ready(model.forward(x, label_mixed))  # mixed 999 path

    assert jnp.allclose(out_unsup, _ref_unsup(model, x), rtol=1e-4, atol=1e-4), "unsup mismatch"
    assert jnp.allclose(out_sup, _ref_sup(model, x, label), rtol=1e-4, atol=1e-4), "sup mismatch"
    assert jnp.allclose(out_mixed, _ref_mixed(model, x, label_mixed),
                        rtol=1e-4, atol=1e-4), "mixed mismatch"

    # exercise the multi-tile path with a partial (masked) last block: N=300, tile cap 128
    model_mt = GaussianMixtureSupervisedPallas(Nclass, Ncpc, dim, seed=0, max_tile=128)
    N2 = 300
    x2 = jax.random.normal(jax.random.PRNGKey(1), (N2, dim), dtype=jnp.float32)
    label2 = np.asarray(jax.random.randint(jax.random.PRNGKey(2), (N2,), 0, Nclass))
    label2_mixed = label2.copy()
    label2_mixed[::5] = 999
    out2_u = jax.block_until_ready(model_mt.forward(x2))
    out2_s = jax.block_until_ready(model_mt.forward(x2, label2))
    out2_m = jax.block_until_ready(model_mt.forward(x2, label2_mixed))
    assert jnp.allclose(out2_u, _ref_unsup(model_mt, x2), rtol=1e-4, atol=1e-4), \
        "unsup (tiled) mismatch"
    assert jnp.allclose(out2_s, _ref_sup(model_mt, x2, label2), rtol=1e-4, atol=1e-4), \
        "sup (tiled) mismatch"
    assert jnp.allclose(out2_m, _ref_mixed(model_mt, x2, label2_mixed), rtol=1e-4, atol=1e-4), \
        "mixed (tiled) mismatch"

    print("KERNEL_OK")
</pallas_src>

<mosaic_0001>
module attributes {stable_mosaic.version = 11 : i64} {
  func.func @_unsup_kernel(%arg0: i32, %arg1: memref<32x16xf32, #tpu.memory_space<vmem>>, %arg2: memref<4x16xf32, #tpu.memory_space<vmem>>, %arg3: memref<1x16xf32, #tpu.memory_space<vmem>>, %arg4: memref<4x1xf32, #tpu.memory_space<vmem>>, %arg5: memref<4x1xf32, #tpu.memory_space<vmem>>, %arg6: memref<1x32xf32, #tpu.memory_space<vmem>>) attributes {dimension_semantics = [#tpu.dimension_semantics<parallel>], iteration_bounds = array<i64: 1>, scalar_prefetch = 0 : i64, scratch_operands = 0 : i64, tpu.core_type = #tpu.core_type<tc>, window_params = [{transform_indices = @transform_0, window_bounds = array<i64: 32, 16>}, {pipeline_mode = #tpu.pipeline_mode<synchronous>, transform_indices = @transform_1, window_bounds = array<i64: 4, 16>}, {pipeline_mode = #tpu.pipeline_mode<synchronous>, transform_indices = @transform_2, window_bounds = array<i64: 1, 16>}, {pipeline_mode = #tpu.pipeline_mode<synchronous>, transform_indices = @transform_3, window_bounds = array<i64: 4, 1>}, {pipeline_mode = #tpu.pipeline_mode<synchronous>, transform_indices = @transform_4, window_bounds = array<i64: 4, 1>}, {transform_indices = @transform_5, window_bounds = array<i64: 1, 32>}]} {
    %c0 = arith.constant 0 : index
    %c0_0 = arith.constant 0 : index
    %0 = vector.load %arg1[%c0, %c0_0] : memref<32x16xf32, #tpu.memory_space<vmem>>, vector<32x16xf32>
    %c0_1 = arith.constant 0 : index
    %c0_2 = arith.constant 0 : index
    %1 = vector.load %arg2[%c0_1, %c0_2] : memref<4x16xf32, #tpu.memory_space<vmem>>, vector<4x16xf32>
    %cst = arith.constant dense<0.000000e+00> : vector<4x32xf32>
    %2 = tpu.matmul %1, %0, %cst {dimension_numbers = #tpu.dot_dimension_numbers<[1], [1], [0], [0], [0, 0, 1, 0], [], []>} : vector<4x16xf32>, vector<32x16xf32>, vector<4x32xf32> -> vector<4x32xf32>
    %c0_3 = arith.constant 0 : index
    %c0_4 = arith.constant 0 : index
    %3 = vector.load %arg3[%c0_3, %c0_4] : memref<1x16xf32, #tpu.memory_space<vmem>>, vector<1x16xf32>
    %4 = arith.mulf %0, %0 : vector<32x16xf32>
    %cst_5 = arith.constant dense<0.000000e+00> : vector<1x32xf32>
    %5 = tpu.matmul %3, %4, %cst_5 {dimension_numbers = #tpu.dot_dimension_numbers<[1], [1], [0], [0], [0, 0, 1, 0], [], []>} : vector<1x16xf32>, vector<32x16xf32>, vector<1x32xf32> -> vector<1x32xf32>
    %c0_6 = arith.constant 0 : index
    %c0_7 = arith.constant 0 : index
    %6 = vector.load %arg4[%c0_6, %c0_7] : memref<4x1xf32, #tpu.memory_space<vmem>>, vector<4x1xf32>
    %7 = vector.broadcast %6 : vector<4x1xf32> to vector<4x32xf32>
    %8 = vector.broadcast %5 : vector<1x32xf32> to vector<4x32xf32>
    %9 = arith.mulf %7, %8 : vector<4x32xf32>
    %10 = arith.subf %2, %9 : vector<4x32xf32>
    %c0_8 = arith.constant 0 : index
    %c0_9 = arith.constant 0 : index
    %11 = vector.load %arg5[%c0_8, %c0_9] : memref<4x1xf32, #tpu.memory_space<vmem>>, vector<4x1xf32>
    %12 = vector.broadcast %11 : vector<4x1xf32> to vector<4x32xf32>
    %13 = arith.addf %10, %12 : vector<4x32xf32>
    %cst_10 = arith.constant dense<0xFF800000> : vector<32xf32>
    %14 = vector.multi_reduction <maximumf>, %13, %cst_10 [0] : vector<4x32xf32> to vector<32xf32>
    %15 = vector.shape_cast %14 : vector<32xf32> to vector<1x32xf32>
    %16 = vector.broadcast %15 : vector<1x32xf32> to vector<4x32xf32>
    %17 = arith.subf %13, %16 : vector<4x32xf32>
    %18 = math.exp %17 : vector<4x32xf32>
    %cst_11 = arith.constant dense<0.000000e+00> : vector<32xf32>
    %19 = vector.multi_reduction <add>, %18, %cst_11 [0] : vector<4x32xf32> to vector<32xf32>
    %20 = vector.shape_cast %19 : vector<32xf32> to vector<1x32xf32>
    %21 = math.log %20 : vector<1x32xf32>
    %22 = arith.addf %15, %21 : vector<1x32xf32>
    %cst_12 = arith.constant 0.000000e+00 : f32
    %23 = vector.broadcast %cst_12 : f32 to vector<1x32xf32>
    %24 = arith.subf %23, %22 : vector<1x32xf32>
    %c0_13 = arith.constant 0 : index
    %c0_14 = arith.constant 0 : index
    %25 = vector.load %arg6[%c0_13, %c0_14] : memref<1x32xf32, #tpu.memory_space<vmem>>, vector<1x32xf32>
    tpu.vector_store %arg6[%c0_13, %c0_14], %24 {strides = array<i32>} : memref<1x32xf32, #tpu.memory_space<vmem>>, vector<1x32xf32>,
    return
  }
  func.func @transform_0(%arg0: i32) -> (i32, i32) {
    %c0_i32 = arith.constant 0 : i32
    %c0_i32_0 = arith.constant 0 : i32
    return %arg0, %c0_i32 : i32, i32
  }
  func.func @transform_1(%arg0: i32) -> (i32, i32) {
    %c0_i32 = arith.constant 0 : i32
    %c0_i32_0 = arith.constant 0 : i32
    %c0_i32_1 = arith.constant 0 : i32
    return %c0_i32, %c0_i32_0 : i32, i32
  }
  func.func @transform_2(%arg0: i32) -> (i32, i32) {
    %c0_i32 = arith.constant 0 : i32
    %c0_i32_0 = arith.constant 0 : i32
    %c0_i32_1 = arith.constant 0 : i32
    return %c0_i32, %c0_i32_0 : i32, i32
  }
  func.func @transform_3(%arg0: i32) -> (i32, i32) {
    %c0_i32 = arith.constant 0 : i32
    %c0_i32_0 = arith.constant 0 : i32
    %c0_i32_1 = arith.constant 0 : i32
    return %c0_i32, %c0_i32_0 : i32, i32
  }
  func.func @transform_4(%arg0: i32) -> (i32, i32) {
    %c0_i32 = arith.constant 0 : i32
    %c0_i32_0 = arith.constant 0 : i32
    %c0_i32_1 = arith.constant 0 : i32
    return %c0_i32, %c0_i32_0 : i32, i32
  }
  func.func @transform_5(%arg0: i32) -> (i32, i32) {
    %c0_i32 = arith.constant 0 : i32
    %c0_i32_0 = arith.constant 0 : i32
    return %c0_i32, %arg0 : i32, i32
  }
}

</mosaic_0001>

<llo_original>
// kernel: tpu_custom_call.1
$region0: #{tpu_custom_call.1}
  #allocation0 [shape = 'u32[]', space=smem, size = 0x4, offset = 0x4, fixed_abs, tag = 'smem constant byte address 0x4 - core index']
  #allocation1 [shape = 'u32[144,128]{1,0:T(1,128)}', space=vmem, size = 0x12000, scoped, tag = 'internal scratch']
  %s0 = inlined_call_operand.vmem [shape: f32[32,16], index: 0, kind: input, shape index: {}]
  %s1 = inlined_call_operand.vmem [shape: f32[4,16], index: 1, kind: input, shape index: {}]
  %s2 = inlined_call_operand.vmem [shape: f32[1,16], index: 2, kind: input, shape index: {}]
  %s3 = inlined_call_operand.vmem [shape: f32[4,1], index: 3, kind: input, shape index: {}]
  %s4 = inlined_call_operand.vmem [shape: f32[4,1], index: 4, kind: input, shape index: {}]
  %s5 = inlined_call_operand.hbm [shape: f32[1,32], index: 5, kind: output, shape index: {}]
  %s6 = sld [smem:[#allocation0]]
  $region30: #{tpu_custom_call.1} parent=0
    _
  %s8 = ssub.s32 1, %s6
  %s9 = scalar_select 0, %s8, %s6
  $region1: #{tpu_custom_call.1} parent=0
    #allocation2 [shape = 'u8[512]{0}', space=vmem, size = 0x400, scoped, tag = 'output window, operand 0, single buffered']
    #allocation3 [shape = 's32[1]{0}', space=sflag, size = 0x4, scoped, tag = 'scoped memory for tpu_custom_call.1']
    %10 = vsyncpa [#allocation3], 0
    // Predicated region
    $region2: #{tpu_custom_call.1} parent=1 // pred_check
      _
    $region3: #{tpu_custom_call.1} parent=1 // pred_check_branch
      %12 = sbr.rel (0) target = $region5
    $region4: #{tpu_custom_call.1} parent=1 // pred_region
      _
    $region5: #{tpu_custom_call.1} parent=1 // pred_fallthru
      _
    // Predicated region
    $region6: #{tpu_custom_call.1} parent=1 // pred_check
      _
    $region7: #{tpu_custom_call.1} parent=1 // pred_check_branch
      %14 = sbr.rel (0) target = $region9
    $region8: #{tpu_custom_call.1} parent=1 // pred_region
      _
    $region9: #{tpu_custom_call.1} parent=1 // pred_fallthru
      _
    // Predicated region
    $region10: #{tpu_custom_call.1} parent=1 // pred_check
      _
    $region11: #{tpu_custom_call.1} parent=1 // pred_check_branch
      %16 = sbr.rel (0) target = $region13
    $region12: #{tpu_custom_call.1} parent=1 // pred_region
      _
    $region13: #{tpu_custom_call.1} parent=1 // pred_fallthru
      _
    // Predicated region
    $region14: #{tpu_custom_call.1} parent=1 // pred_check
      _
    $region15: #{tpu_custom_call.1} parent=1 // pred_check_branch
      %18 = sbr.rel (0) target = $region17
    $region16: #{tpu_custom_call.1} parent=1 // pred_region
      _
    $region17: #{tpu_custom_call.1} parent=1 // pred_fallthru
      _
    // Predicated region
    $region18: #{tpu_custom_call.1} parent=1 // pred_check
      _
    $region19: #{tpu_custom_call.1} parent=1 // pred_check_branch
      %20 = sbr.rel (0) target = $region21
    $region20: #{tpu_custom_call.1} parent=1 // pred_region
      _
    $region21: #{tpu_custom_call.1} parent=1 // pred_fallthru
      _
    %v21 = vld [vmem:[%s0] sm:$0xff]
    %v22 = vld [vmem:[%s0 + $0x8] sm:$0xff]
    %v23 = vld [vmem:[%s0 + $0x10] sm:$0xff]
    %v24 = vld [vmem:[%s0 + $0x18] sm:$0xff]
    %v25 = vld [vmem:[%s1] sm:$0xf]
    %vm26 = vcmask 130048
    %v28 = vsel %vm26, %v25, 0
    %v31 = vsel %vm26, %v21, 0
    %v34 = vsel %vm26, %v22, 0
    %v37 = vsel %vm26, %v23, 0
    %v40 = vsel %vm26, %v24, 0
    %42 = vmatprep.subr.mxu0 0.0
    %43 = vmatpush1.xpose.msra.mxu0 0.0
    %44 = vmatprep.subr.mxu0 0.0
    %45 = vmatpush1.xpose.msra.mxu0 0.0
    %46 = vmatprep.subr.mxu0 0.0
    %47 = vmatpush1.xpose.msra.mxu0 0.0
    %48 = vmatprep.subr.mxu0 0.0
    %49 = vmatpush1.xpose.msra.mxu0 0.0
    %50 = vmatprep.subr.mxu0 0.0
    %51 = vmatpush1.xpose.msra.mxu0 0.0
    %52 = vmatprep.subr.mxu0 0.0
    %53 = vmatpush1.xpose.msra.mxu0 0.0
    %54 = vmatprep.subr.mxu0 0.0
    %55 = vmatpush1.xpose.msra.mxu0 0.0
    %56 = vmatprep.subr.mxu0 0.0
    %57 = vmatpush1.xpose.msra.mxu0 0.0
    %58 = vmatprep.subr.mxu0 0.0
    %59 = vmatpush1.xpose.msra.mxu0 0.0
    %60 = vmatprep.subr.mxu0 0.0
    %61 = vmatpush1.xpose.msra.mxu0 0.0
    %62 = vmatprep.subr.mxu0 0.0
    %63 = vmatpush1.xpose.msra.mxu0 0.0
    %64 = vmatprep.subr.mxu0 0.0
    %65 = vmatpush1.xpose.msra.mxu0 0.0
    %66 = vmatprep.subr.mxu0 0.0
    %67 = vmatpush1.xpose.msra.mxu0 %v40
    %68 = vmatprep.subr.mxu0 0.0
    %69 = vmatpush1.xpose.msra.mxu0 %v37
    %70 = vmatprep.subr.mxu0 0.0
    %71 = vmatpush1.xpose.msra.mxu0 %v34
    %72 = vmatprep.subr.mxu0 0.0
    %73 = vmatpush1.xpose.msra.mxu0 %v31
    %74 = vmatprep.subr.mxu0 0.0
    %75 = vmatpush2.xpose.msra.mxu0 0.0
    %76 = vmatprep.subr.mxu0 0.0
    %77 = vmatpush2.xpose.msra.mxu0 0.0
    %78 = vmatprep.subr.mxu0 0.0
    %79 = vmatpush2.xpose.msra.mxu0 0.0
    %80 = vmatprep.subr.mxu0 0.0
    %81 = vmatpush2.xpose.msra.mxu0 0.0
    %82 = vmatprep.subr.mxu0 0.0
    %83 = vmatpush2.xpose.msra.mxu0 0.0
    %84 = vmatprep.subr.mxu0 0.0
    %85 = vmatpush2.xpose.msra.mxu0 0.0
    %86 = vmatprep.subr.mxu0 0.0
    %87 = vmatpush2.xpose.msra.mxu0 0.0
    %88 = vmatprep.subr.mxu0 0.0
    %89 = vmatpush2.xpose.msra.mxu0 0.0
    %90 = vmatprep.subr.mxu0 0.0
    %91 = vmatpush2.xpose.msra.mxu0 0.0
    %92 = vmatprep.subr.mxu0 0.0
    %93 = vmatpush2.xpose.msra.mxu0 0.0
    %94 = vmatprep.subr.mxu0 0.0
    %95 = vmatpush2.xpose.msra.mxu0 0.0
    %96 = vmatprep.subr.mxu0 0.0
    %97 = vmatpush2.xpose.msra.mxu0 0.0
    %98 = vmatprep.subr.mxu0 0.0
    %99 = vmatpush2.xpose.msra.mxu0 0.0
    %100 = vmatprep.subr.mxu0 0.0
    %101 = vmatpush2.xpose.msra.mxu0 0.0
    %102 = vmatprep.subr.mxu0 0.0
    %103 = vmatpush2.xpose.msra.mxu0 0.0
    %104 = vmatprep.subr.mxu0 0.0
    %105 = vmatpush2.xpose.msra.mxu0 0.0
    %106 = vmatprep.mubr.f32.mxu0 0.0
    %107 = vmatmul.mubr.f32.gmra.mxu0 %v28
    %v108 = vpop.f32.mrf.mxu0
    %v109 = vadd.f32 0.0, %v108
    %v110 = vpop.f32.mrf.mxu0
    %111 = vdwg.mxu0
    %v112 = vld [vmem:[%s2] sm:$0x1]
    %v113 = vmul.f32 %v21, %v21
    %v114 = vmul.f32 %v22, %v22
    %v115 = vmul.f32 %v23, %v23
    %v116 = vmul.f32 %v24, %v24
    %v118 = vsel %vm26, %v112, 0
    %v121 = vsel %vm26, %v113, 0
    %v124 = vsel %vm26, %v114, 0
    %v127 = vsel %vm26, %v115, 0
    %v130 = vsel %vm26, %v116, 0
    %132 = vmatprep.subr.mxu0 0.0
    %133 = vmatpush1.xpose.msra.mxu0 0.0
    %134 = vmatprep.subr.mxu0 0.0
    %135 = vmatpush1.xpose.msra.mxu0 0.0
    %136 = vmatprep.subr.mxu0 0.0
    %137 = vmatpush1.xpose.msra.mxu0 0.0
    %138 = vmatprep.subr.mxu0 0.0
    %139 = vmatpush1.xpose.msra.mxu0 0.0
    %140 = vmatprep.subr.mxu0 0.0
    %141 = vmatpush1.xpose.msra.mxu0 0.0
    %142 = vmatprep.subr.mxu0 0.0
    %143 = vmatpush1.xpose.msra.mxu0 0.0
    %144 = vmatprep.subr.mxu0 0.0
    %145 = vmatpush1.xpose.msra.mxu0 0.0
    %146 = vmatprep.subr.mxu0 0.0
    %147 = vmatpush1.xpose.msra.mxu0 0.0
    %148 = vmatprep.subr.mxu0 0.0
    %149 = vmatpush1.xpose.msra.mxu0 0.0
    %150 = vmatprep.subr.mxu0 0.0
    %151 = vmatpush1.xpose.msra.mxu0 0.0
    %152 = vmatprep.subr.mxu0 0.0
    %153 = vmatpush1.xpose.msra.mxu0 0.0
    %154 = vmatprep.subr.mxu0 0.0
    %155 = vmatpush1.xpose.msra.mxu0 0.0
    %156 = vmatprep.subr.mxu0 0.0
    %157 = vmatpush1.xpose.msra.mxu0 %v130
    %158 = vmatprep.subr.mxu0 0.0
    %159 = vmatpush1.xpose.msra.mxu0 %v127
    %160 = vmatprep.subr.mxu0 0.0
    %161 = vmatpush1.xpose.msra.mxu0 %v124
    %162 = vmatprep.subr.mxu0 0.0
    %163 = vmatpush1.xpose.msra.mxu0 %v121
    %164 = vmatprep.subr.mxu0 0.0
    %165 = vmatpush2.xpose.msra.mxu0 0.0
    %166 = vmatprep.subr.mxu0 0.0
    %167 = vmatpush2.xpose.msra.mxu0 0.0
    %168 = vmatprep.subr.mxu0 0.0
    %169 = vmatpush2.xpose.msra.mxu0 0.0
    %170 = vmatprep.subr.mxu0 0.0
    %171 = vmatpush2.xpose.msra.mxu0 0.0
    %172 = vmatprep.subr.mxu0 0.0
    %173 = vmatpush2.xpose.msra.mxu0 0.0
    %174 = vmatprep.subr.mxu0 0.0
    %175 = vmatpush2.xpose.msra.mxu0 0.0
    %176 = vmatprep.subr.mxu0 0.0
    %177 = vmatpush2.xpose.msra.mxu0 0.0
    %178 = vmatprep.subr.mxu0 0.0
    %179 = vmatpush2.xpose.msra.mxu0 0.0
    %180 = vmatprep.subr.mxu0 0.0
    %181 = vmatpush2.xpose.msra.mxu0 0.0
    %182 = vmatprep.subr.mxu0 0.0
    %183 = vmatpush2.xpose.msra.mxu0 0.0
    %184 = vmatprep.subr.mxu0 0.0
    %185 = vmatpush2.xpose.msra.mxu0 0.0
    %186 = vmatprep.subr.mxu0 0.0
    %187 = vmatpush2.xpose.msra.mxu0 0.0
    %188 = vmatprep.subr.mxu0 0.0
    %189 = vmatpush2.xpose.msra.mxu0 0.0
    %190 = vmatprep.subr.mxu0 0.0
    %191 = vmatpush2.xpose.msra.mxu0 0.0
    %192 = vmatprep.subr.mxu0 0.0
    %193 = vmatpush2.xpose.msra.mxu0 0.0
    %194 = vmatprep.subr.mxu0 0.0
    %195 = vmatpush2.xpose.msra.mxu0 0.0
    %196 = vmatprep.mubr.f32.mxu0 0.0
    %197 = vmatmul.mubr.f32.gmra.mxu0 %v118
    %v198 = vpop.f32.mrf.mxu0
    %v199 = vadd.f32 0.0, %v198
    %v200 = vpop.f32.mrf.mxu0
    %201 = vdwg.mxu0
    %v202 = vld [vmem:[%s3] sm:$0xf]
    %204 = vset.pattern.permute.xlu0 0
    %205 = vperm.xlu0 %204, %v202
    %v206 = vpop.permute.xlu0 %205
    %v208 = vlaneseq
    %v209 = vshrl.u32 %v208, 7
    %v210 = vsub.s32 0, %v209
    %v211 = vrot.slane %v199, %v210
    %v212 = vmul.f32 %v206, %v211
    %v213 = vsub.f32 %v109, %v212
    %v214 = vld [vmem:[%s4] sm:$0xf]
    %216 = vset.pattern.permute.xlu0 0
    %217 = vperm.xlu0 %216, %v214
    %v218 = vpop.permute.xlu0 %217
    %v220 = vadd.f32 %v213, %v218
    %vm221 = vcmask 257024
    %v222 = vsel %vm221, %v220, -inf
    %v223 = vrot.slane %v222, 4
    %v224 = vmax.f32 %v222, %v223
    %v225 = vrot.slane %v224, 2
    %v226 = vmax.f32 %v224, %v225
    %v227 = vrot.slane %v226, 1
    %v228 = vmax.f32 %v226, %v227
    %v229 = vsub.f32 %v220, %v228
    %v230 = vmul.f32 %v229, 1.442695
    %v231 = vpow.pop %v230
    %v232 = vsel %vm221, %v231, 0.0
    %v233 = vrot.slane %v232, 4
    %v234 = vadd.f32 %v232, %v233
    %v235 = vrot.slane %v234, 2
    %v236 = vadd.f32 %v234, %v235
    %v237 = vrot.slane %v236, 1
    %v238 = vadd.f32 %v236, %v237
    %v239 = vlog2.pop %v238
    %v240 = vmul.f32 %v239, 0.6931472
    %v241 = vadd.f32 %v228, %v240
    %v242 = vsub.f32 0.0, %v241
    %vm243 = vcmask 253952
    %244 = vst.msk [vmem:[#allocation2] sm:$0x1] %vm243, %v242
    // Predicated region
    $region22: #{tpu_custom_call.1} parent=1 // pred_check
      _
    $region23: #{tpu_custom_call.1} parent=1 // pred_check_branch
      %246 = sbr.rel (0) target = $region25
    $region24: #{tpu_custom_call.1} parent=1 // pred_region
      %s248 = ssub.s32 16, 16
      %249 = vsyncadd [#allocation3], %s248
      %s251 = sshll.u32 [#allocation2], 4
      %s252 = int_to_ptr.vmem [resolvable:$true] %s251
      %254 = dma.vmem_to_hbm [thread:$0]  %s252, 16, %s5, [#allocation3]
    $region25: #{tpu_custom_call.1} parent=1 // pred_fallthru
      _
    // Predicated region
    $region26: #{tpu_custom_call.1} parent=1 // pred_check
      _
    $region27: #{tpu_custom_call.1} parent=1 // pred_check_branch
      %256 = sbr.rel (0) target = $region29
    $region28: #{tpu_custom_call.1} parent=1 // pred_region
      %257 = dma.done [#allocation3], 16
    $region29: #{tpu_custom_call.1} parent=1 // pred_fallthru
      _
    %258 = vsyncpa [#allocation3], 1

</llo_original>
